<compile_context>
chip_gen: v6e
topology: v6e:2x2x1
jax: 0.10.0
libtpu: 0.0.40
codegen_flags: <defaults>
</compile_context>

<pallas_src>
import jax
import jax.numpy as jnp
from jax import lax
from jax.experimental import pallas as pl
from jax.experimental.pallas import tpu as pltpu


def _round_up(x, m):
    return ((x + m - 1) // m) * m


def _pad2(x, rm, cm):
    """Zero-pad a 2-D array so rows % rm == 0 and cols % cm == 0."""
    r, c = x.shape
    pr, pc = _round_up(r, rm) - r, _round_up(c, cm) - c
    if pr or pc:
        x = jnp.pad(x, ((0, pr), (0, pc)))
    return x


# -----------------------------------------------------------------------------
# Kernel 1: out(M, N) = a(M, Kc) @ b(Kc, N) where N (= SVD rank) is small and
# kept as a single untiled block.  The f32 output block stays resident across
# the (arbitrary) k axis, so it doubles as the accumulator (no VMEM scratch).
# Inputs are cast to bf16 per-tile inside the kernel (single-pass MXU feed).
# -----------------------------------------------------------------------------
def _matmul_nn_kernel(a_ref, b_ref, o_ref):
    @pl.when(pl.program_id(1) == 0)
    def _():
        o_ref[...] = jnp.zeros_like(o_ref)

    o_ref[...] += jnp.dot(a_ref[...].astype(jnp.bfloat16),
                          b_ref[...].astype(jnp.bfloat16),
                          preferred_element_type=jnp.float32)


def matmul_small_rank(a, b, *, tm=512, tk=512):
    """o = a @ b with b's second dim (rank) small; returns f32."""
    M, Kc = a.shape
    Kc2, N = b.shape
    assert Kc == Kc2
    tm = min(tm, _round_up(M, 8))
    tk = min(tk, _round_up(Kc, 128))
    a_p = _pad2(a, tm, tk)          # (Mp, Kp)
    b_p = _pad2(b, tk, 1)           # (Kp, N) — zero rows contribute nothing
    Mp, Kp = a_p.shape
    grid = (Mp // tm, Kp // tk)

    flops = 2 * Mp * Kp * N
    bytes_accessed = (a_p.size * a_p.dtype.itemsize
                      + b_p.size * b_p.dtype.itemsize
                      + Mp * N * 4)

    out = pl.pallas_call(
        _matmul_nn_kernel,
        out_shape=jax.ShapeDtypeStruct((Mp, N), jnp.float32),
        grid_spec=pltpu.PrefetchScalarGridSpec(
            num_scalar_prefetch=0, grid=grid,
            in_specs=[pl.BlockSpec((tm, tk), lambda i, k: (i, k)),
                      pl.BlockSpec((tk, N), lambda i, k: (k, 0))],
            out_specs=pl.BlockSpec((tm, N), lambda i, k: (i, 0))),
        compiler_params=pltpu.CompilerParams(
            dimension_semantics=("parallel", "arbitrary")),
        cost_estimate=pl.CostEstimate(flops=flops, transcendentals=0,
                                      bytes_accessed=bytes_accessed),
    )(a_p, b_p)
    return out[:M]


# -----------------------------------------------------------------------------
# Kernel 2: out(M, N) = a(M, Kr) @ b(N, Kr).T — the transpose lives purely in
# the dot dimension_numbers / index_map (both inputs read row-major).  The
# whole (small) rank dim is one block, so there is no k grid axis and no
# accumulator scratch; the grid is fully "parallel" for megacore sharding and
# the output tile is lane-dense (tn multiple of 128).
# -----------------------------------------------------------------------------
def _matmul_nt_kernel(a_ref, b_ref, o_ref):
    o_ref[...] = lax.dot_general(
        a_ref[...], b_ref[...],
        dimension_numbers=(((1,), (1,)), ((), ())),      # 'mk,nk->mn'
        preferred_element_type=jnp.float32).astype(o_ref.dtype)


def matmul_nt(a, b, *, tm=512, tn=1024):
    """o = a @ b.T with small shared last dim (rank); returns f32."""
    M, Kr = a.shape
    N, Kr2 = b.shape
    assert Kr == Kr2
    tm = min(tm, _round_up(M, 8))
    tn = min(tn, _round_up(N, 128))
    a_p = _pad2(a, tm, 1)
    b_p = _pad2(b, tn, 1)
    Mp, Np = a_p.shape[0], b_p.shape[0]
    grid = (Mp // tm, Np // tn)

    flops = 2 * Mp * Np * Kr
    bytes_accessed = (a_p.size * a_p.dtype.itemsize
                      + b_p.size * b_p.dtype.itemsize
                      + Mp * Np * 4)

    out = pl.pallas_call(
        _matmul_nt_kernel,
        out_shape=jax.ShapeDtypeStruct((Mp, Np), jnp.float32),
        grid_spec=pltpu.PrefetchScalarGridSpec(
            num_scalar_prefetch=0, grid=grid,
            in_specs=[pl.BlockSpec((tm, Kr), lambda i, j: (i, 0)),
                      pl.BlockSpec((tn, Kr), lambda i, j: (j, 0))],
            out_specs=pl.BlockSpec((tm, tn), lambda i, j: (i, j))),
        compiler_params=pltpu.CompilerParams(
            dimension_semantics=("parallel", "parallel")),
        cost_estimate=pl.CostEstimate(flops=flops, transcendentals=0,
                                      bytes_accessed=bytes_accessed),
    )(a_p, b_p)
    return out[:M, :N]


def svd_ae_forward(adj_mat, norm_adj, user_sv, item_sv, lambda_mat):
    """Pallas implementation of SVD_AE.forward(lambda_mat) -> rating (U, I)."""
    # TODO(synk): torch.sparse.mm has no sparse Pallas equivalent; the binary
    # adjacency matrices are used as dense MXU operands instead.
    inv_lambda = (1.0 / lambda_mat).astype(jnp.float32)
    item_sv_scaled = item_sv.astype(jnp.float32) * inv_lambda[None, :]   # (I, K), tiny
    P = matmul_small_rank(norm_adj, item_sv_scaled)                      # (U, K) f32
    Q = matmul_small_rank(adj_mat, user_sv)                              # (I, K) f32
    rating = matmul_nt(P.astype(jnp.bfloat16), Q.astype(jnp.bfloat16))   # (U, I) f32
    return rating


if __name__ == "__main__":
    U, I, K = 128, 256, 32  # users, items, rank (small synthetic sizes)

    key = jax.random.PRNGKey(0)
    k1, k2, k3, k4, k5 = jax.random.split(key, 5)
    user_sv = jax.random.normal(k1, (U, K), dtype=jnp.float32)
    item_sv = jax.random.normal(k2, (I, K), dtype=jnp.float32)
    lambda_mat = jax.random.uniform(k3, (K,), dtype=jnp.float32,
                                    minval=0.5, maxval=1.5)
    # sparse-ish binary interaction matrices (kept dense in memory)
    adj_mat = (jax.random.uniform(k4, (I, U)) < 0.05).astype(jnp.float32)
    norm_adj = (jax.random.uniform(k5, (U, I)) < 0.05).astype(jnp.float32) * 0.1

    fwd = jax.jit(svd_ae_forward)
    rating = fwd(adj_mat, norm_adj, user_sv, item_sv, lambda_mat)
    rating = jax.block_until_ready(rating)

    # pure-JAX f32 reference of the original (un-reassociated) chain
    A_ref = item_sv @ jnp.diag(1.0 / lambda_mat) @ user_sv.T
    A_sparse_ref = (adj_mat @ A_ref.T).T
    rating_ref = norm_adj @ A_sparse_ref

    assert rating.shape == (U, I)
    # bf16 MXU operands with f32 accumulation -> slightly looser tolerance
    max_err = float(jnp.max(jnp.abs(rating - rating_ref)))
    assert jnp.allclose(rating, rating_ref, atol=1.5e-1, rtol=5e-2), max_err
    print("KERNEL_OK")
</pallas_src>

<mosaic_0001>
module attributes {stable_mosaic.version = 11 : i64} {
  func.func @_matmul_nn_kernel(%arg0: i32, %arg1: i32, %arg2: memref<128x256xf32, #tpu.memory_space<vmem>>, %arg3: memref<256x32xf32, #tpu.memory_space<vmem>>, %arg4: memref<128x32xf32, #tpu.memory_space<vmem>>) attributes {dimension_semantics = [#tpu.dimension_semantics<parallel>, #tpu.dimension_semantics<arbitrary>], iteration_bounds = array<i64: 1, 1>, scalar_prefetch = 0 : i64, scratch_operands = 0 : i64, tpu.core_type = #tpu.core_type<tc>, window_params = [{transform_indices = @transform_0, window_bounds = array<i64: 128, 256>}, {transform_indices = @transform_1, window_bounds = array<i64: 256, 32>}, {transform_indices = @transform_2, window_bounds = array<i64: 128, 32>}]} {
    %c0_i32 = arith.constant 0 : i32
    %0 = arith.cmpi eq, %arg1, %c0_i32 : i32
    %1 = arith.extui %0 : i1 to i32
    %c0_i32_0 = arith.constant 0 : i32
    %2 = arith.cmpi ne, %1, %c0_i32_0 : i32
    scf.if %2 {
      %cst_8 = arith.constant 0.000000e+00 : f32
      %11 = vector.broadcast %cst_8 : f32 to vector<128x32xf32>
      %c0_9 = arith.constant 0 : index
      %c0_10 = arith.constant 0 : index
      %12 = vector.load %arg4[%c0_9, %c0_10] : memref<128x32xf32, #tpu.memory_space<vmem>>, vector<128x32xf32>
      tpu.vector_store %arg4[%c0_9, %c0_10], %11 {strides = array<i32>} : memref<128x32xf32, #tpu.memory_space<vmem>>, vector<128x32xf32>,
    } else {
    }
    %c0 = arith.constant 0 : index
    %c0_1 = arith.constant 0 : index
    %3 = vector.load %arg4[%c0, %c0_1] : memref<128x32xf32, #tpu.memory_space<vmem>>, vector<128x32xf32>
    %c0_2 = arith.constant 0 : index
    %c0_3 = arith.constant 0 : index
    %4 = vector.load %arg2[%c0_2, %c0_3] : memref<128x256xf32, #tpu.memory_space<vmem>>, vector<128x256xf32>
    %5 = arith.truncf %4 : vector<128x256xf32> to vector<128x256xbf16>
    %c0_4 = arith.constant 0 : index
    %c0_5 = arith.constant 0 : index
    %6 = vector.load %arg3[%c0_4, %c0_5] : memref<256x32xf32, #tpu.memory_space<vmem>>, vector<256x32xf32>
    %7 = arith.truncf %6 : vector<256x32xf32> to vector<256x32xbf16>
    %cst = arith.constant dense<0.000000e+00> : vector<128x32xf32>
    %8 = tpu.matmul %5, %7, %cst {dimension_numbers = #tpu.dot_dimension_numbers<[1], [0], [0], [1], [0, 0, 1, 1], [], []>} : vector<128x256xbf16>, vector<256x32xbf16>, vector<128x32xf32> -> vector<128x32xf32>
    %9 = arith.addf %3, %8 : vector<128x32xf32>
    %c0_6 = arith.constant 0 : index
    %c0_7 = arith.constant 0 : index
    %10 = vector.load %arg4[%c0_6, %c0_7] : memref<128x32xf32, #tpu.memory_space<vmem>>, vector<128x32xf32>
    tpu.vector_store %arg4[%c0_6, %c0_7], %9 {strides = array<i32>} : memref<128x32xf32, #tpu.memory_space<vmem>>, vector<128x32xf32>,
    return
  }
  func.func @transform_0(%arg0: i32, %arg1: i32) -> (i32, i32) {
    %c0_i32 = arith.constant 0 : i32
    return %arg0, %arg1 : i32, i32
  }
  func.func @transform_1(%arg0: i32, %arg1: i32) -> (i32, i32) {
    %c0_i32 = arith.constant 0 : i32
    %c0_i32_0 = arith.constant 0 : i32
    return %arg1, %c0_i32 : i32, i32
  }
  func.func @transform_2(%arg0: i32, %arg1: i32) -> (i32, i32) {
    %c0_i32 = arith.constant 0 : i32
    %c0_i32_0 = arith.constant 0 : i32
    return %arg0, %c0_i32 : i32, i32
  }
}

module attributes {stable_mosaic.version = 11 : i64} {
  func.func @_matmul_nt_kernel(%arg0: i32, %arg1: i32, %arg2: memref<128x32xbf16, #tpu.memory_space<vmem>>, %arg3: memref<256x32xbf16, #tpu.memory_space<vmem>>, %arg4: memref<128x256xf32, #tpu.memory_space<vmem>>) attributes {dimension_semantics = [#tpu.dimension_semantics<parallel>, #tpu.dimension_semantics<parallel>], iteration_bounds = array<i64: 1, 1>, scalar_prefetch = 0 : i64, scratch_operands = 0 : i64, tpu.core_type = #tpu.core_type<tc>, window_params = [{transform_indices = @transform_0, window_bounds = array<i64: 128, 32>}, {transform_indices = @transform_1, window_bounds = array<i64: 256, 32>}, {transform_indices = @transform_2, window_bounds = array<i64: 128, 256>}]} {
    %c0 = arith.constant 0 : index
    %c0_0 = arith.constant 0 : index
    %0 = vector.load %arg2[%c0, %c0_0] : memref<128x32xbf16, #tpu.memory_space<vmem>>, vector<128x32xbf16>
    %c0_1 = arith.constant 0 : index
    %c0_2 = arith.constant 0 : index
    %1 = vector.load %arg3[%c0_1, %c0_2] : memref<256x32xbf16, #tpu.memory_space<vmem>>, vector<256x32xbf16>
    %cst = arith.constant dense<0.000000e+00> : vector<128x256xf32>
    %2 = tpu.matmul %0, %1, %cst {dimension_numbers = #tpu.dot_dimension_numbers<[1], [1], [0], [0], [0, 0, 1, 0], [], []>} : vector<128x32xbf16>, vector<256x32xbf16>, vector<128x256xf32> -> vector<128x256xf32>
    %c0_3 = arith.constant 0 : index
    %c0_4 = arith.constant 0 : index
    %3 = vector.load %arg4[%c0_3, %c0_4] : memref<128x256xf32, #tpu.memory_space<vmem>>, vector<128x256xf32>
    tpu.vector_store %arg4[%c0_3, %c0_4], %2 {strides = array<i32>} : memref<128x256xf32, #tpu.memory_space<vmem>>, vector<128x256xf32>,
    return
  }
  func.func @transform_0(%arg0: i32, %arg1: i32) -> (i32, i32) {
    %c0_i32 = arith.constant 0 : i32
    %c0_i32_0 = arith.constant 0 : i32
    return %arg0, %c0_i32 : i32, i32
  }
  func.func @transform_1(%arg0: i32, %arg1: i32) -> (i32, i32) {
    %c0_i32 = arith.constant 0 : i32
    %c0_i32_0 = arith.constant 0 : i32
    return %arg1, %c0_i32 : i32, i32
  }
  func.func @transform_2(%arg0: i32, %arg1: i32) -> (i32, i32) {
    %c0_i32 = arith.constant 0 : i32
    return %arg0, %arg1 : i32, i32
  }
}

module attributes {stable_mosaic.version = 11 : i64} {
  func.func @_matmul_nn_kernel(%arg0: i32, %arg1: i32, %arg2: memref<256x128xf32, #tpu.memory_space<vmem>>, %arg3: memref<128x32xf32, #tpu.memory_space<vmem>>, %arg4: memref<256x32xf32, #tpu.memory_space<vmem>>) attributes {dimension_semantics = [#tpu.dimension_semantics<parallel>, #tpu.dimension_semantics<arbitrary>], iteration_bounds = array<i64: 1, 1>, scalar_prefetch = 0 : i64, scratch_operands = 0 : i64, tpu.core_type = #tpu.core_type<tc>, window_params = [{transform_indices = @transform_0, window_bounds = array<i64: 256, 128>}, {transform_indices = @transform_1, window_bounds = array<i64: 128, 32>}, {transform_indices = @transform_2, window_bounds = array<i64: 256, 32>}]} {
    %c0_i32 = arith.constant 0 : i32
    %0 = arith.cmpi eq, %arg1, %c0_i32 : i32
    %1 = arith.extui %0 : i1 to i32
    %c0_i32_0 = arith.constant 0 : i32
    %2 = arith.cmpi ne, %1, %c0_i32_0 : i32
    scf.if %2 {
      %cst_8 = arith.constant 0.000000e+00 : f32
      %11 = vector.broadcast %cst_8 : f32 to vector<256x32xf32>
      %c0_9 = arith.constant 0 : index
      %c0_10 = arith.constant 0 : index
      %12 = vector.load %arg4[%c0_9, %c0_10] : memref<256x32xf32, #tpu.memory_space<vmem>>, vector<256x32xf32>
      tpu.vector_store %arg4[%c0_9, %c0_10], %11 {strides = array<i32>} : memref<256x32xf32, #tpu.memory_space<vmem>>, vector<256x32xf32>,
    } else {
    }
    %c0 = arith.constant 0 : index
    %c0_1 = arith.constant 0 : index
    %3 = vector.load %arg4[%c0, %c0_1] : memref<256x32xf32, #tpu.memory_space<vmem>>, vector<256x32xf32>
    %c0_2 = arith.constant 0 : index
    %c0_3 = arith.constant 0 : index
    %4 = vector.load %arg2[%c0_2, %c0_3] : memref<256x128xf32, #tpu.memory_space<vmem>>, vector<256x128xf32>
    %5 = arith.truncf %4 : vector<256x128xf32> to vector<256x128xbf16>
    %c0_4 = arith.constant 0 : index
    %c0_5 = arith.constant 0 : index
    %6 = vector.load %arg3[%c0_4, %c0_5] : memref<128x32xf32, #tpu.memory_space<vmem>>, vector<128x32xf32>
    %7 = arith.truncf %6 : vector<128x32xf32> to vector<128x32xbf16>
    %cst = arith.constant dense<0.000000e+00> : vector<256x32xf32>
    %8 = tpu.matmul %5, %7, %cst {dimension_numbers = #tpu.dot_dimension_numbers<[1], [0], [0], [1], [0, 0, 1, 1], [], []>} : vector<256x128xbf16>, vector<128x32xbf16>, vector<256x32xf32> -> vector<256x32xf32>
    %9 = arith.addf %3, %8 : vector<256x32xf32>
    %c0_6 = arith.constant 0 : index
    %c0_7 = arith.constant 0 : index
    %10 = vector.load %arg4[%c0_6, %c0_7] : memref<256x32xf32, #tpu.memory_space<vmem>>, vector<256x32xf32>
    tpu.vector_store %arg4[%c0_6, %c0_7], %9 {strides = array<i32>} : memref<256x32xf32, #tpu.memory_space<vmem>>, vector<256x32xf32>,
    return
  }
  func.func @transform_0(%arg0: i32, %arg1: i32) -> (i32, i32) {
    %c0_i32 = arith.constant 0 : i32
    return %arg0, %arg1 : i32, i32
  }
  func.func @transform_1(%arg0: i32, %arg1: i32) -> (i32, i32) {
    %c0_i32 = arith.constant 0 : i32
    %c0_i32_0 = arith.constant 0 : i32
    return %arg1, %c0_i32 : i32, i32
  }
  func.func @transform_2(%arg0: i32, %arg1: i32) -> (i32, i32) {
    %c0_i32 = arith.constant 0 : i32
    %c0_i32_0 = arith.constant 0 : i32
    return %arg0, %c0_i32 : i32, i32
  }
}

</mosaic_0001>

<llo_original>
// kernel: svd_ae_forward.4
$region0: #{svd_ae_forward.4}
  #allocation0 [shape = 'u32[]', space=smem, size = 0x4, offset = 0x4, fixed_abs, tag = 'smem constant byte address 0x4 - core index']
  #allocation1 [shape = 'u32[144,128]{1,0:T(1,128)}', space=vmem, size = 0x12000, scoped, tag = 'internal scratch']
  %s0 = inlined_call_operand.vmem [shape: f32[256,128], index: 0, kind: input, shape index: {}]
  %s1 = inlined_call_operand.vmem [shape: f32[128,32], index: 1, kind: input, shape index: {}]
  %s2 = inlined_call_operand.vmem [shape: f32[256,32], index: 2, kind: output, shape index: {}]
  %s3 = sld [smem:[#allocation0]]
  $region22: #{svd_ae_forward.4} parent=0
    _
  %s5 = ssub.s32 1, %s3
  %s6 = scalar_select 0, %s5, %s3
  // Predicated region
  $region2: #{svd_ae_forward.4} parent=0 // pred_check
    _
  $region3: #{svd_ae_forward.4} parent=0 // pred_check_branch
    %8 = sbr.rel (0) target = $region5
  $region4: #{svd_ae_forward.4} parent=0 // pred_region
    _
  $region5: #{svd_ae_forward.4} parent=0 // pred_fallthru
    _
  // Predicated region
  $region6: #{svd_ae_forward.4} parent=0 // pred_check
    _
  $region7: #{svd_ae_forward.4} parent=0 // pred_check_branch
    %10 = sbr.rel (0) target = $region9
  $region8: #{svd_ae_forward.4} parent=0 // pred_region
    _
  $region9: #{svd_ae_forward.4} parent=0 // pred_fallthru
    _
  %p12 = scmp.eq.s32.totalorder 0, 0
  // Predicated region
  $region10: #{svd_ae_forward.4} parent=0 // pred_check
    %p13 = pneg %p12
  $region11: #{svd_ae_forward.4} parent=0 // pred_check_branch
    %15 = sbr.rel (%p13) target = $region13
  $region12: #{svd_ae_forward.4} parent=0 // pred_region
    %vm16 = vcmask 261120
    %17 = vst.msk [vmem:[%s2] sm:$0xff] %vm16, 0.0
    %18 = vst.msk [vmem:[%s2 + $0x8] sm:$0xff] %vm16, 0.0
    %19 = vst.msk [vmem:[%s2 + $0x10] sm:$0xff] %vm16, 0.0
    %20 = vst.msk [vmem:[%s2 + $0x18] sm:$0xff] %vm16, 0.0
    %21 = vst.msk [vmem:[%s2 + $0x20] sm:$0xff] %vm16, 0.0
    %22 = vst.msk [vmem:[%s2 + $0x28] sm:$0xff] %vm16, 0.0
    %23 = vst.msk [vmem:[%s2 + $0x30] sm:$0xff] %vm16, 0.0
    %24 = vst.msk [vmem:[%s2 + $0x38] sm:$0xff] %vm16, 0.0
    %25 = vst.msk [vmem:[%s2 + $0x40] sm:$0xff] %vm16, 0.0
    %26 = vst.msk [vmem:[%s2 + $0x48] sm:$0xff] %vm16, 0.0
    %27 = vst.msk [vmem:[%s2 + $0x50] sm:$0xff] %vm16, 0.0
    %28 = vst.msk [vmem:[%s2 + $0x58] sm:$0xff] %vm16, 0.0
    %29 = vst.msk [vmem:[%s2 + $0x60] sm:$0xff] %vm16, 0.0
    %30 = vst.msk [vmem:[%s2 + $0x68] sm:$0xff] %vm16, 0.0
    %31 = vst.msk [vmem:[%s2 + $0x70] sm:$0xff] %vm16, 0.0
    %32 = vst.msk [vmem:[%s2 + $0x78] sm:$0xff] %vm16, 0.0
    %33 = vst.msk [vmem:[%s2 + $0x80] sm:$0xff] %vm16, 0.0
    %34 = vst.msk [vmem:[%s2 + $0x88] sm:$0xff] %vm16, 0.0
    %35 = vst.msk [vmem:[%s2 + $0x90] sm:$0xff] %vm16, 0.0
    %36 = vst.msk [vmem:[%s2 + $0x98] sm:$0xff] %vm16, 0.0
    %37 = vst.msk [vmem:[%s2 + $0xa0] sm:$0xff] %vm16, 0.0
    %38 = vst.msk [vmem:[%s2 + $0xa8] sm:$0xff] %vm16, 0.0
    %39 = vst.msk [vmem:[%s2 + $0xb0] sm:$0xff] %vm16, 0.0
    %40 = vst.msk [vmem:[%s2 + $0xb8] sm:$0xff] %vm16, 0.0
    %41 = vst.msk [vmem:[%s2 + $0xc0] sm:$0xff] %vm16, 0.0
    %42 = vst.msk [vmem:[%s2 + $0xc8] sm:$0xff] %vm16, 0.0
    %43 = vst.msk [vmem:[%s2 + $0xd0] sm:$0xff] %vm16, 0.0
    %44 = vst.msk [vmem:[%s2 + $0xd8] sm:$0xff] %vm16, 0.0
    %45 = vst.msk [vmem:[%s2 + $0xe0] sm:$0xff] %vm16, 0.0
    %46 = vst.msk [vmem:[%s2 + $0xe8] sm:$0xff] %vm16, 0.0
    %47 = vst.msk [vmem:[%s2 + $0xf0] sm:$0xff] %vm16, 0.0
    %48 = vst.msk [vmem:[%s2 + $0xf8] sm:$0xff] %vm16, 0.0
  $region13: #{svd_ae_forward.4} parent=0 // pred_fallthru
    _
  %v49 = vld [vmem:[%s2] sm:$0xff]
  %v50 = vld [vmem:[%s2 + $0x8] sm:$0xff]
  %v51 = vld [vmem:[%s2 + $0x10] sm:$0xff]
  %v52 = vld [vmem:[%s2 + $0x18] sm:$0xff]
  %v53 = vld [vmem:[%s2 + $0x20] sm:$0xff]
  %v54 = vld [vmem:[%s2 + $0x28] sm:$0xff]
  %v55 = vld [vmem:[%s2 + $0x30] sm:$0xff]
  %v56 = vld [vmem:[%s2 + $0x38] sm:$0xff]
  %v57 = vld [vmem:[%s2 + $0x40] sm:$0xff]
  %v58 = vld [vmem:[%s2 + $0x48] sm:$0xff]
  %v59 = vld [vmem:[%s2 + $0x50] sm:$0xff]
  %v60 = vld [vmem:[%s2 + $0x58] sm:$0xff]
  %v61 = vld [vmem:[%s2 + $0x60] sm:$0xff]
  %v62 = vld [vmem:[%s2 + $0x68] sm:$0xff]
  %v63 = vld [vmem:[%s2 + $0x70] sm:$0xff]
  %v64 = vld [vmem:[%s2 + $0x78] sm:$0xff]
  %v65 = vld [vmem:[%s2 + $0x80] sm:$0xff]
  %v66 = vld [vmem:[%s2 + $0x88] sm:$0xff]
  %v67 = vld [vmem:[%s2 + $0x90] sm:$0xff]
  %v68 = vld [vmem:[%s2 + $0x98] sm:$0xff]
  %v69 = vld [vmem:[%s2 + $0xa0] sm:$0xff]
  %v70 = vld [vmem:[%s2 + $0xa8] sm:$0xff]
  %v71 = vld [vmem:[%s2 + $0xb0] sm:$0xff]
  %v72 = vld [vmem:[%s2 + $0xb8] sm:$0xff]
  %v73 = vld [vmem:[%s2 + $0xc0] sm:$0xff]
  %v74 = vld [vmem:[%s2 + $0xc8] sm:$0xff]
  %v75 = vld [vmem:[%s2 + $0xd0] sm:$0xff]
  %v76 = vld [vmem:[%s2 + $0xd8] sm:$0xff]
  %v77 = vld [vmem:[%s2 + $0xe0] sm:$0xff]
  %v78 = vld [vmem:[%s2 + $0xe8] sm:$0xff]
  %v79 = vld [vmem:[%s2 + $0xf0] sm:$0xff]
  %v80 = vld [vmem:[%s2 + $0xf8] sm:$0xff]
  %v81 = vld [vmem:[%s0] sm:$0xff]
  %v82 = vld [vmem:[%s0 + $0x8] sm:$0xff]
  %v83 = vld [vmem:[%s0 + $0x10] sm:$0xff]
  %v84 = vld [vmem:[%s0 + $0x18] sm:$0xff]
  %v85 = vld [vmem:[%s0 + $0x20] sm:$0xff]
  %v86 = vld [vmem:[%s0 + $0x28] sm:$0xff]
  %v87 = vld [vmem:[%s0 + $0x30] sm:$0xff]
  %v88 = vld [vmem:[%s0 + $0x38] sm:$0xff]
  %v89 = vld [vmem:[%s0 + $0x40] sm:$0xff]
  %v90 = vld [vmem:[%s0 + $0x48] sm:$0xff]
  %v91 = vld [vmem:[%s0 + $0x50] sm:$0xff]
  %v92 = vld [vmem:[%s0 + $0x58] sm:$0xff]
  %v93 = vld [vmem:[%s0 + $0x60] sm:$0xff]
  %v94 = vld [vmem:[%s0 + $0x68] sm:$0xff]
  %v95 = vld [vmem:[%s0 + $0x70] sm:$0xff]
  %v96 = vld [vmem:[%s0 + $0x78] sm:$0xff]
  %v97 = vld [vmem:[%s0 + $0x80] sm:$0xff]
  %v98 = vld [vmem:[%s0 + $0x88] sm:$0xff]
  %v99 = vld [vmem:[%s0 + $0x90] sm:$0xff]
  %v100 = vld [vmem:[%s0 + $0x98] sm:$0xff]
  %v101 = vld [vmem:[%s0 + $0xa0] sm:$0xff]
  %v102 = vld [vmem:[%s0 + $0xa8] sm:$0xff]
  %v103 = vld [vmem:[%s0 + $0xb0] sm:$0xff]
  %v104 = vld [vmem:[%s0 + $0xb8] sm:$0xff]
  %v105 = vld [vmem:[%s0 + $0xc0] sm:$0xff]
  %v106 = vld [vmem:[%s0 + $0xc8] sm:$0xff]
  %v107 = vld [vmem:[%s0 + $0xd0] sm:$0xff]
  %v108 = vld [vmem:[%s0 + $0xd8] sm:$0xff]
  %v109 = vld [vmem:[%s0 + $0xe0] sm:$0xff]
  %v110 = vld [vmem:[%s0 + $0xe8] sm:$0xff]
  %v111 = vld [vmem:[%s0 + $0xf0] sm:$0xff]
  %v112 = vld [vmem:[%s0 + $0xf8] sm:$0xff]
  %v113 = vpack.c.bf16 %v82, %v81
  %v114 = vpack.c.bf16 %v84, %v83
  %v115 = vpack.c.bf16 %v86, %v85
  %v116 = vpack.c.bf16 %v88, %v87
  %v117 = vpack.c.bf16 %v90, %v89
  %v118 = vpack.c.bf16 %v92, %v91
  %v119 = vpack.c.bf16 %v94, %v93
  %v120 = vpack.c.bf16 %v96, %v95
  %v121 = vpack.c.bf16 %v98, %v97
  %v122 = vpack.c.bf16 %v100, %v99
  %v123 = vpack.c.bf16 %v102, %v101
  %v124 = vpack.c.bf16 %v104, %v103
  %v125 = vpack.c.bf16 %v106, %v105
  %v126 = vpack.c.bf16 %v108, %v107
  %v127 = vpack.c.bf16 %v110, %v109
  %v128 = vpack.c.bf16 %v112, %v111
  %v129 = vld [vmem:[%s1] sm:$0xff]
  %v130 = vld [vmem:[%s1 + $0x8] sm:$0xff]
  %v131 = vld [vmem:[%s1 + $0x10] sm:$0xff]
  %v132 = vld [vmem:[%s1 + $0x18] sm:$0xff]
  %v133 = vld [vmem:[%s1 + $0x20] sm:$0xff]
  %v134 = vld [vmem:[%s1 + $0x28] sm:$0xff]
  %v135 = vld [vmem:[%s1 + $0x30] sm:$0xff]
  %v136 = vld [vmem:[%s1 + $0x38] sm:$0xff]
  %v137 = vld [vmem:[%s1 + $0x40] sm:$0xff]
  %v138 = vld [vmem:[%s1 + $0x48] sm:$0xff]
  %v139 = vld [vmem:[%s1 + $0x50] sm:$0xff]
  %v140 = vld [vmem:[%s1 + $0x58] sm:$0xff]
  %v141 = vld [vmem:[%s1 + $0x60] sm:$0xff]
  %v142 = vld [vmem:[%s1 + $0x68] sm:$0xff]
  %v143 = vld [vmem:[%s1 + $0x70] sm:$0xff]
  %v144 = vld [vmem:[%s1 + $0x78] sm:$0xff]
  %v145 = vpack.c.bf16 %v130, %v129
  %v146 = vpack.c.bf16 %v132, %v131
  %v147 = vpack.c.bf16 %v134, %v133
  %v148 = vpack.c.bf16 %v136, %v135
  %v149 = vpack.c.bf16 %v138, %v137
  %v150 = vpack.c.bf16 %v140, %v139
  %v151 = vpack.c.bf16 %v142, %v141
  %v152 = vpack.c.bf16 %v144, %v143
  %153 = vmatprep.subr.bf16.mxu0 0
  %154 = vmatpush1.bf16.msra.mxu0 %v152
  %155 = vmatprep.subr.bf16.mxu0 0
  %156 = vmatpush1.bf16.msra.mxu0 %v151
  %157 = vmatprep.subr.bf16.mxu0 0
  %158 = vmatpush1.bf16.msra.mxu0 %v150
  %159 = vmatprep.subr.bf16.mxu0 0
  %160 = vmatpush1.bf16.msra.mxu0 %v149
  %161 = vmatprep.subr.bf16.mxu0 0
  %162 = vmatpush1.bf16.msra.mxu0 %v148
  %163 = vmatprep.subr.bf16.mxu0 0
  %164 = vmatpush1.bf16.msra.mxu0 %v147
  %165 = vmatprep.subr.bf16.mxu0 0
  %166 = vmatpush1.bf16.msra.mxu0 %v146
  %167 = vmatprep.subr.bf16.mxu0 0
  %168 = vmatpush1.bf16.msra.mxu0 %v145
  %169 = vmatprep.subr.bf16.mxu0 0
  %170 = vmatpush2.bf16.msra.mxu0 0
  %171 = vmatprep.subr.bf16.mxu0 0
  %172 = vmatpush2.bf16.msra.mxu0 0
  %173 = vmatprep.subr.bf16.mxu0 0
  %174 = vmatpush2.bf16.msra.mxu0 0
  %175 = vmatprep.subr.bf16.mxu0 0
  %176 = vmatpush2.bf16.msra.mxu0 0
  %177 = vmatprep.subr.bf16.mxu0 0
  %178 = vmatpush2.bf16.msra.mxu0 0
  %179 = vmatprep.subr.bf16.mxu0 0
  %180 = vmatpush2.bf16.msra.mxu0 0
  %181 = vmatprep.subr.bf16.mxu0 0
  %182 = vmatpush2.bf16.msra.mxu0 0
  %183 = vmatprep.subr.bf16.mxu0 0
  %184 = vmatpush2.bf16.msra.mxu0 0
  %185 = vmatprep.mubr.bf16.mxu0 0
  %186 = vmatmul.mubr.bf16.gmra.mxu0 %v113
  %v187 = vpop.f32.mrf.mxu0
  %v188 = vadd.f32 0.0, %v187
  %v189 = vpop.f32.mrf.mxu0
  %v190 = vpop.f32.mrf.mxu0
  %v191 = vadd.f32 0.0, %v190
  %v192 = vpop.f32.mrf.mxu0
  %193 = vmatprep.mubr.bf16.mxu0 0
  %194 = vmatmul.mubr.bf16.gmra.mxu0 %v114
  %v195 = vpop.f32.mrf.mxu0
  %v196 = vadd.f32 0.0, %v195
  %v197 = vpop.f32.mrf.mxu0
  %v198 = vpop.f32.mrf.mxu0
  %v199 = vadd.f32 0.0, %v198
  %v200 = vpop.f32.mrf.mxu0
  %201 = vmatprep.mubr.bf16.mxu0 0
  %202 = vmatmul.mubr.bf16.gmra.mxu0 %v115
  %v203 = vpop.f32.mrf.mxu0
  %v204 = vadd.f32 0.0, %v203
  %v205 = vpop.f32.mrf.mxu0
  %v206 = vpop.f32.mrf.mxu0
  %v207 = vadd.f32 0.0, %v206
  %v208 = vpop.f32.mrf.mxu0
  %209 = vmatprep.mubr.bf16.mxu0 0
  %210 = vmatmul.mubr.bf16.gmra.mxu0 %v116
  %v211 = vpop.f32.mrf.mxu0
  %v212 = vadd.f32 0.0, %v211
  %v213 = vpop.f32.mrf.mxu0
  %v214 = vpop.f32.mrf.mxu0
  %v215 = vadd.f32 0.0, %v214
  %v216 = vpop.f32.mrf.mxu0
  %217 = vmatprep.mubr.bf16.mxu0 0
  %218 = vmatmul.mubr.bf16.gmra.mxu0 %v117
  %v219 = vpop.f32.mrf.mxu0
  %v220 = vadd.f32 0.0, %v219
  %v221 = vpop.f32.mrf.mxu0
  %v222 = vpop.f32.mrf.mxu0
  %v223 = vadd.f32 0.0, %v222
  %v224 = vpop.f32.mrf.mxu0
  %225 = vmatprep.mubr.bf16.mxu0 0
  %226 = vmatmul.mubr.bf16.gmra.mxu0 %v118
  %v227 = vpop.f32.mrf.mxu0
  %v228 = vadd.f32 0.0, %v227
  %v229 = vpop.f32.mrf.mxu0
  %v230 = vpop.f32.mrf.mxu0
  %v231 = vadd.f32 0.0, %v230
  %v232 = vpop.f32.mrf.mxu0
  %233 = vmatprep.mubr.bf16.mxu0 0
  %234 = vmatmul.mubr.bf16.gmra.mxu0 %v119
  %v235 = vpop.f32.mrf.mxu0
  %v236 = vadd.f32 0.0, %v235
  %v237 = vpop.f32.mrf.mxu0
  %v238 = vpop.f32.mrf.mxu0
  %v239 = vadd.f32 0.0, %v238
  %v240 = vpop.f32.mrf.mxu0
  %241 = vmatprep.mubr.bf16.mxu0 0
  %242 = vmatmul.mubr.bf16.gmra.mxu0 %v120
  %v243 = vpop.f32.mrf.mxu0
  %v244 = vadd.f32 0.0, %v243
  %v245 = vpop.f32.mrf.mxu0
  %v246 = vpop.f32.mrf.mxu0
  %v247 = vadd.f32 0.0, %v246
  %v248 = vpop.f32.mrf.mxu0
  %249 = vmatprep.mubr.bf16.mxu0 0
  %250 = vmatmul.mubr.bf16.gmra.mxu0 %v121
  %v251 = vpop.f32.mrf.mxu0
  %v252 = vadd.f32 0.0, %v251
  %v253 = vpop.f32.mrf.mxu0
  %v254 = vpop.f32.mrf.mxu0
  %v255 = vadd.f32 0.0, %v254
  %v256 = vpop.f32.mrf.mxu0
  %257 = vmatprep.mubr.bf16.mxu0 0
  %258 = vmatmul.mubr.bf16.gmra.mxu0 %v122
  %v259 = vpop.f32.mrf.mxu0
  %v260 = vadd.f32 0.0, %v259
  %v261 = vpop.f32.mrf.mxu0
  %v262 = vpop.f32.mrf.mxu0
  %v263 = vadd.f32 0.0, %v262
  %v264 = vpop.f32.mrf.mxu0
  %265 = vmatprep.mubr.bf16.mxu0 0
  %266 = vmatmul.mubr.bf16.gmra.mxu0 %v123
  %v267 = vpop.f32.mrf.mxu0
  %v268 = vadd.f32 0.0, %v267
  %v269 = vpop.f32.mrf.mxu0
  %v270 = vpop.f32.mrf.mxu0
  %v271 = vadd.f32 0.0, %v270
  %v272 = vpop.f32.mrf.mxu0
  %273 = vmatprep.mubr.bf16.mxu0 0
  %274 = vmatmul.mubr.bf16.gmra.mxu0 %v124
  %v275 = vpop.f32.mrf.mxu0
  %v276 = vadd.f32 0.0, %v275
  %v277 = vpop.f32.mrf.mxu0
  %v278 = vpop.f32.mrf.mxu0
  %v279 = vadd.f32 0.0, %v278
  %v280 = vpop.f32.mrf.mxu0
  %281 = vmatprep.mubr.bf16.mxu0 0
  %282 = vmatmul.mubr.bf16.gmra.mxu0 %v125
  %v283 = vpop.f32.mrf.mxu0
  %v284 = vadd.f32 0.0, %v283
  %v285 = vpop.f32.mrf.mxu0
  %v286 = vpop.f32.mrf.mxu0
  %v287 = vadd.f32 0.0, %v286
  %v288 = vpop.f32.mrf.mxu0
  %289 = vmatprep.mubr.bf16.mxu0 0
  %290 = vmatmul.mubr.bf16.gmra.mxu0 %v126
  %v291 = vpop.f32.mrf.mxu0
  %v292 = vadd.f32 0.0, %v291
  %v293 = vpop.f32.mrf.mxu0
  %v294 = vpop.f32.mrf.mxu0
  %v295 = vadd.f32 0.0, %v294
  %v296 = vpop.f32.mrf.mxu0
  %297 = vmatprep.mubr.bf16.mxu0 0
  %298 = vmatmul.mubr.bf16.gmra.mxu0 %v127
  %v299 = vpop.f32.mrf.mxu0
  %v300 = vadd.f32 0.0, %v299
  %v301 = vpop.f32.mrf.mxu0
  %v302 = vpop.f32.mrf.mxu0
  %v303 = vadd.f32 0.0, %v302
  %v304 = vpop.f32.mrf.mxu0
  %305 = vmatprep.mubr.bf16.mxu0 0
  %306 = vmatmul.mubr.bf16.gmra.mxu0 %v128
  %v307 = vpop.f32.mrf.mxu0
  %v308 = vadd.f32 0.0, %v307
  %v309 = vpop.f32.mrf.mxu0
  %v310 = vpop.f32.mrf.mxu0
  %v311 = vadd.f32 0.0, %v310
  %v312 = vpop.f32.mrf.mxu0
  %313 = vdwg.mxu0
  %v314 = vadd.f32 %v49, %v188
  %v315 = vadd.f32 %v50, %v191
  %v316 = vadd.f32 %v51, %v196
  %v317 = vadd.f32 %v52, %v199
  %v318 = vadd.f32 %v53, %v204
  %v319 = vadd.f32 %v54, %v207
  %v320 = vadd.f32 %v55, %v212
  %v321 = vadd.f32 %v56, %v215
  %v322 = vadd.f32 %v57, %v220
  %v323 = vadd.f32 %v58, %v223
  %v324 = vadd.f32 %v59, %v228
  %v325 = vadd.f32 %v60, %v231
  %v326 = vadd.f32 %v61, %v236
  %v327 = vadd.f32 %v62, %v239
  %v328 = vadd.f32 %v63, %v244
  %v329 = vadd.f32 %v64, %v247
  %v330 = vadd.f32 %v65, %v252
  %v331 = vadd.f32 %v66, %v255
  %v332 = vadd.f32 %v67, %v260
  %v333 = vadd.f32 %v68, %v263
  %v334 = vadd.f32 %v69, %v268
  %v335 = vadd.f32 %v70, %v271
  %v336 = vadd.f32 %v71, %v276
  %v337 = vadd.f32 %v72, %v279
  %v338 = vadd.f32 %v73, %v284
  %v339 = vadd.f32 %v74, %v287
  %v340 = vadd.f32 %v75, %v292
  %v341 = vadd.f32 %v76, %v295
  %v342 = vadd.f32 %v77, %v300
  %v343 = vadd.f32 %v78, %v303
  %v344 = vadd.f32 %v79, %v308
  %v345 = vadd.f32 %v80, %v311
  %vm346 = vcmask 261120
  %347 = vst.msk [vmem:[%s2] sm:$0xff] %vm346, %v314
  %348 = vst.msk [vmem:[%s2 + $0x8] sm:$0xff] %vm346, %v315
  %349 = vst.msk [vmem:[%s2 + $0x10] sm:$0xff] %vm346, %v316
  %350 = vst.msk [vmem:[%s2 + $0x18] sm:$0xff] %vm346, %v317
  %351 = vst.msk [vmem:[%s2 + $0x20] sm:$0xff] %vm346, %v318
  %352 = vst.msk [vmem:[%s2 + $0x28] sm:$0xff] %vm346, %v319
  %353 = vst.msk [vmem:[%s2 + $0x30] sm:$0xff] %vm346, %v320
  %354 = vst.msk [vmem:[%s2 + $0x38] sm:$0xff] %vm346, %v321
  %355 = vst.msk [vmem:[%s2 + $0x40] sm:$0xff] %vm346, %v322
  %356 = vst.msk [vmem:[%s2 + $0x48] sm:$0xff] %vm346, %v323
  %357 = vst.msk [vmem:[%s2 + $0x50] sm:$0xff] %vm346, %v324
  %358 = vst.msk [vmem:[%s2 + $0x58] sm:$0xff] %vm346, %v325
  %359 = vst.msk [vmem:[%s2 + $0x60] sm:$0xff] %vm346, %v326
  %360 = vst.msk [vmem:[%s2 + $0x68] sm:$0xff] %vm346, %v327
  %361 = vst.msk [vmem:[%s2 + $0x70] sm:$0xff] %vm346, %v328
  %362 = vst.msk [vmem:[%s2 + $0x78] sm:$0xff] %vm346, %v329
  %363 = vst.msk [vmem:[%s2 + $0x80] sm:$0xff] %vm346, %v330
  %364 = vst.msk [vmem:[%s2 + $0x88] sm:$0xff] %vm346, %v331
  %365 = vst.msk [vmem:[%s2 + $0x90] sm:$0xff] %vm346, %v332
  %366 = vst.msk [vmem:[%s2 + $0x98] sm:$0xff] %vm346, %v333
  %367 = vst.msk [vmem:[%s2 + $0xa0] sm:$0xff] %vm346, %v334
  %368 = vst.msk [vmem:[%s2 + $0xa8] sm:$0xff] %vm346, %v335
  %369 = vst.msk [vmem:[%s2 + $0xb0] sm:$0xff] %vm346, %v336
  %370 = vst.msk [vmem:[%s2 + $0xb8] sm:$0xff] %vm346, %v337
  %371 = vst.msk [vmem:[%s2 + $0xc0] sm:$0xff] %vm346, %v338
  %372 = vst.msk [vmem:[%s2 + $0xc8] sm:$0xff] %vm346, %v339
  %373 = vst.msk [vmem:[%s2 + $0xd0] sm:$0xff] %vm346, %v340
  %374 = vst.msk [vmem:[%s2 + $0xd8] sm:$0xff] %vm346, %v341
  %375 = vst.msk [vmem:[%s2 + $0xe0] sm:$0xff] %vm346, %v342
  %376 = vst.msk [vmem:[%s2 + $0xe8] sm:$0xff] %vm346, %v343
  %377 = vst.msk [vmem:[%s2 + $0xf0] sm:$0xff] %vm346, %v344
  %378 = vst.msk [vmem:[%s2 + $0xf8] sm:$0xff] %vm346, %v345
  // Predicated region
  $region14: #{svd_ae_forward.4} parent=0 // pred_check
    _
  $region15: #{svd_ae_forward.4} parent=0 // pred_check_branch
    %380 = sbr.rel (0) target = $region17
  $region16: #{svd_ae_forward.4} parent=0 // pred_region
    _
  $region17: #{svd_ae_forward.4} parent=0 // pred_fallthru
    _
  // Predicated region
  $region18: #{svd_ae_forward.4} parent=0 // pred_check
    _
  $region19: #{svd_ae_forward.4} parent=0 // pred_check_branch
    %382 = sbr.rel (0) target = $region21
  $region20: #{svd_ae_forward.4} parent=0 // pred_region
    _
  $region21: #{svd_ae_forward.4} parent=0 // pred_fallthru
    _

// kernel: svd_ae_forward.5
$region0: #{svd_ae_forward.5}
  #allocation0 [shape = 'u32[]', space=smem, size = 0x4, offset = 0x4, fixed_abs, tag = 'smem constant byte address 0x4 - core index']
  #allocation1 [shape = 'u32[144,128]{1,0:T(1,128)}', space=vmem, size = 0x12000, scoped, tag = 'internal scratch']
  %s0 = inlined_call_operand.vmem [shape: bf16[128,32], index: 0, kind: input, shape index: {}]
  %s1 = inlined_call_operand.vmem [shape: bf16[256,32], index: 1, kind: input, shape index: {}]
  %s2 = inlined_call_operand.hbm [shape: f32[128,256], index: 2, kind: output, shape index: {}]
  %s3 = sld [smem:[#allocation0]]
  $region18: #{svd_ae_forward.5} parent=0
    _
  %s5 = ssub.s32 1, %s3
  %s6 = scalar_select 0, %s5, %s3
  $region1: #{svd_ae_forward.5} parent=0
    #allocation2 [shape = 'u8[131072]{0}', space=vmem, size = 0x20000, scoped, tag = 'output window, operand 0, single buffered']
    #allocation3 [shape = 's32[1]{0}', space=sflag, size = 0x4, scoped, tag = 'scoped memory for svd_ae_forward.5']
    %7 = vsyncpa [#allocation3], 0
    // Predicated region
    $region2: #{svd_ae_forward.5} parent=1 // pred_check
      _
    $region3: #{svd_ae_forward.5} parent=1 // pred_check_branch
      %9 = sbr.rel (0) target = $region5
    $region4: #{svd_ae_forward.5} parent=1 // pred_region
      _
    $region5: #{svd_ae_forward.5} parent=1 // pred_fallthru
      _
    // Predicated region
    $region6: #{svd_ae_forward.5} parent=1 // pred_check
      _
    $region7: #{svd_ae_forward.5} parent=1 // pred_check_branch
      %11 = sbr.rel (0) target = $region9
    $region8: #{svd_ae_forward.5} parent=1 // pred_region
      _
    $region9: #{svd_ae_forward.5} parent=1 // pred_fallthru
      _
    %v13 = vld [vmem:[%s0] sm:$0xf]
    %v14 = vld [vmem:[%s0 + $0x4] sm:$0xf]
    %v15 = vld [vmem:[%s0 + $0x8] sm:$0xf]
    %v16 = vld [vmem:[%s0 + $0xc] sm:$0xf]
    %v17 = vld [vmem:[%s0 + $0x10] sm:$0xf]
    %v18 = vld [vmem:[%s0 + $0x14] sm:$0xf]
    %v19 = vld [vmem:[%s0 + $0x18] sm:$0xf]
    %v20 = vld [vmem:[%s0 + $0x1c] sm:$0xf]
    %v21 = vld [vmem:[%s0 + $0x20] sm:$0xf]
    %v22 = vld [vmem:[%s0 + $0x24] sm:$0xf]
    %v23 = vld [vmem:[%s0 + $0x28] sm:$0xf]
    %v24 = vld [vmem:[%s0 + $0x2c] sm:$0xf]
    %v25 = vld [vmem:[%s0 + $0x30] sm:$0xf]
    %v26 = vld [vmem:[%s0 + $0x34] sm:$0xf]
    %v27 = vld [vmem:[%s0 + $0x38] sm:$0xf]
    %v28 = vld [vmem:[%s0 + $0x3c] sm:$0xf]
    %v29 = vld [vmem:[%s1] sm:$0xf]
    %v30 = vld [vmem:[%s1 + $0x4] sm:$0xf]
    %v31 = vld [vmem:[%s1 + $0x8] sm:$0xf]
    %v32 = vld [vmem:[%s1 + $0xc] sm:$0xf]
    %v33 = vld [vmem:[%s1 + $0x10] sm:$0xf]
    %v34 = vld [vmem:[%s1 + $0x14] sm:$0xf]
    %v35 = vld [vmem:[%s1 + $0x18] sm:$0xf]
    %v36 = vld [vmem:[%s1 + $0x1c] sm:$0xf]
    %v37 = vld [vmem:[%s1 + $0x20] sm:$0xf]
    %v38 = vld [vmem:[%s1 + $0x24] sm:$0xf]
    %v39 = vld [vmem:[%s1 + $0x28] sm:$0xf]
    %v40 = vld [vmem:[%s1 + $0x2c] sm:$0xf]
    %v41 = vld [vmem:[%s1 + $0x30] sm:$0xf]
    %v42 = vld [vmem:[%s1 + $0x34] sm:$0xf]
    %v43 = vld [vmem:[%s1 + $0x38] sm:$0xf]
    %v44 = vld [vmem:[%s1 + $0x3c] sm:$0xf]
    %v45 = vld [vmem:[%s1 + $0x40] sm:$0xf]
    %v46 = vld [vmem:[%s1 + $0x44] sm:$0xf]
    %v47 = vld [vmem:[%s1 + $0x48] sm:$0xf]
    %v48 = vld [vmem:[%s1 + $0x4c] sm:$0xf]
    %v49 = vld [vmem:[%s1 + $0x50] sm:$0xf]
    %v50 = vld [vmem:[%s1 + $0x54] sm:$0xf]
    %v51 = vld [vmem:[%s1 + $0x58] sm:$0xf]
    %v52 = vld [vmem:[%s1 + $0x5c] sm:$0xf]
    %v53 = vld [vmem:[%s1 + $0x60] sm:$0xf]
    %v54 = vld [vmem:[%s1 + $0x64] sm:$0xf]
    %v55 = vld [vmem:[%s1 + $0x68] sm:$0xf]
    %v56 = vld [vmem:[%s1 + $0x6c] sm:$0xf]
    %v57 = vld [vmem:[%s1 + $0x70] sm:$0xf]
    %v58 = vld [vmem:[%s1 + $0x74] sm:$0xf]
    %v59 = vld [vmem:[%s1 + $0x78] sm:$0xf]
    %v60 = vld [vmem:[%s1 + $0x7c] sm:$0xf]
    %v77 = vunpack.c.l.b16 %v13
    %v78 = vunpack.c.l.b16 %v14
    %v79 = vunpack.c.l.b16 %v15
    %v80 = vunpack.c.l.b16 %v16
    %v81 = vunpack.c.l.b16 %v17
    %v82 = vunpack.c.l.b16 %v18
    %v83 = vunpack.c.l.b16 %v19
    %v84 = vunpack.c.l.b16 %v20
    %v85 = vunpack.c.l.b16 %v21
    %v86 = vunpack.c.l.b16 %v22
    %v87 = vunpack.c.l.b16 %v23
    %v88 = vunpack.c.l.b16 %v24
    %v89 = vunpack.c.l.b16 %v25
    %v90 = vunpack.c.l.b16 %v26
    %v91 = vunpack.c.l.b16 %v27
    %v92 = vunpack.c.l.b16 %v28
    %v93 = vpack.c.b16 %v78, %v77
    %v94 = vpack.c.b16 %v80, %v79
    %v95 = vpack.c.b16 %v82, %v81
    %v96 = vpack.c.b16 %v84, %v83
    %v97 = vpack.c.b16 %v86, %v85
    %v98 = vpack.c.b16 %v88, %v87
    %v99 = vpack.c.b16 %v90, %v89
    %v100 = vpack.c.b16 %v92, %v91
    %v133 = vunpack.c.l.b16 %v29
    %v134 = vunpack.c.l.b16 %v30
    %v135 = vunpack.c.l.b16 %v31
    %v136 = vunpack.c.l.b16 %v32
    %v137 = vunpack.c.l.b16 %v33
    %v138 = vunpack.c.l.b16 %v34
    %v139 = vunpack.c.l.b16 %v35
    %v140 = vunpack.c.l.b16 %v36
    %v141 = vunpack.c.l.b16 %v37
    %v142 = vunpack.c.l.b16 %v38
    %v143 = vunpack.c.l.b16 %v39
    %v144 = vunpack.c.l.b16 %v40
    %v145 = vunpack.c.l.b16 %v41
    %v146 = vunpack.c.l.b16 %v42
    %v147 = vunpack.c.l.b16 %v43
    %v148 = vunpack.c.l.b16 %v44
    %v149 = vunpack.c.l.b16 %v45
    %v150 = vunpack.c.l.b16 %v46
    %v151 = vunpack.c.l.b16 %v47
    %v152 = vunpack.c.l.b16 %v48
    %v153 = vunpack.c.l.b16 %v49
    %v154 = vunpack.c.l.b16 %v50
    %v155 = vunpack.c.l.b16 %v51
    %v156 = vunpack.c.l.b16 %v52
    %v157 = vunpack.c.l.b16 %v53
    %v158 = vunpack.c.l.b16 %v54
    %v159 = vunpack.c.l.b16 %v55
    %v160 = vunpack.c.l.b16 %v56
    %v161 = vunpack.c.l.b16 %v57
    %v162 = vunpack.c.l.b16 %v58
    %v163 = vunpack.c.l.b16 %v59
    %v164 = vunpack.c.l.b16 %v60
    %v165 = vpack.c.b16 %v134, %v133
    %v166 = vpack.c.b16 %v136, %v135
    %v167 = vpack.c.b16 %v138, %v137
    %v168 = vpack.c.b16 %v140, %v139
    %v169 = vpack.c.b16 %v142, %v141
    %v170 = vpack.c.b16 %v144, %v143
    %v171 = vpack.c.b16 %v146, %v145
    %v172 = vpack.c.b16 %v148, %v147
    %v173 = vpack.c.b16 %v150, %v149
    %v174 = vpack.c.b16 %v152, %v151
    %v175 = vpack.c.b16 %v154, %v153
    %v176 = vpack.c.b16 %v156, %v155
    %v177 = vpack.c.b16 %v158, %v157
    %v178 = vpack.c.b16 %v160, %v159
    %v179 = vpack.c.b16 %v162, %v161
    %v180 = vpack.c.b16 %v164, %v163
    %vm181 = vcmask 261120
    %v183 = vsel %vm181, %v93, 0
    %v186 = vsel %vm181, %v94, 0
    %v189 = vsel %vm181, %v95, 0
    %v192 = vsel %vm181, %v96, 0
    %v195 = vsel %vm181, %v97, 0
    %v198 = vsel %vm181, %v98, 0
    %v201 = vsel %vm181, %v99, 0
    %v204 = vsel %vm181, %v100, 0
    %v207 = vsel %vm181, %v165, 0
    %v210 = vsel %vm181, %v166, 0
    %v213 = vsel %vm181, %v167, 0
    %v216 = vsel %vm181, %v168, 0
    %v219 = vsel %vm181, %v169, 0
    %v222 = vsel %vm181, %v170, 0
    %v225 = vsel %vm181, %v171, 0
    %v228 = vsel %vm181, %v172, 0
    %v231 = vsel %vm181, %v173, 0
    %v234 = vsel %vm181, %v174, 0
    %v237 = vsel %vm181, %v175, 0
    %v240 = vsel %vm181, %v176, 0
    %v243 = vsel %vm181, %v177, 0
    %v246 = vsel %vm181, %v178, 0
    %v249 = vsel %vm181, %v179, 0
    %v252 = vsel %vm181, %v180, 0
    %254 = vmatprep.subr.bf16.mxu0 0
    %255 = vmatpush1.bf16.xpose.msra.mxu0 %v228
    %256 = vmatprep.subr.bf16.mxu0 0
    %257 = vmatpush1.bf16.xpose.msra.mxu0 %v225
    %258 = vmatprep.subr.bf16.mxu0 0
    %259 = vmatpush1.bf16.xpose.msra.mxu0 %v222
    %260 = vmatprep.subr.bf16.mxu0 0
    %261 = vmatpush1.bf16.xpose.msra.mxu0 %v219
    %262 = vmatprep.subr.bf16.mxu0 0
    %263 = vmatpush1.bf16.xpose.msra.mxu0 %v216
    %264 = vmatprep.subr.bf16.mxu0 0
    %265 = vmatpush1.bf16.xpose.msra.mxu0 %v213
    %266 = vmatprep.subr.bf16.mxu0 0
    %267 = vmatpush1.bf16.xpose.msra.mxu0 %v210
    %268 = vmatprep.subr.bf16.mxu0 0
    %269 = vmatpush1.bf16.xpose.msra.mxu0 %v207
    %270 = vmatprep.subr.bf16.mxu0 0
    %271 = vmatpush2.bf16.xpose.msra.mxu0 %v252
    %272 = vmatprep.subr.bf16.mxu0 0
    %273 = vmatpush2.bf16.xpose.msra.mxu0 %v249
    %274 = vmatprep.subr.bf16.mxu0 0
    %275 = vmatpush2.bf16.xpose.msra.mxu0 %v246
    %276 = vmatprep.subr.bf16.mxu0 0
    %277 = vmatpush2.bf16.xpose.msra.mxu0 %v243
    %278 = vmatprep.subr.bf16.mxu0 0
    %279 = vmatpush2.bf16.xpose.msra.mxu0 %v240
    %280 = vmatprep.subr.bf16.mxu0 0
    %281 = vmatpush2.bf16.xpose.msra.mxu0 %v237
    %282 = vmatprep.subr.bf16.mxu0 0
    %283 = vmatpush2.bf16.xpose.msra.mxu0 %v234
    %284 = vmatprep.subr.bf16.mxu0 0
    %285 = vmatpush2.bf16.xpose.msra.mxu0 %v231
    %286 = vmatprep.mubr.bf16.mxu0 0
    %287 = vmatmul.mubr.bf16.gmra.mxu0 %v183
    %v288 = vpop.f32.mrf.mxu0
    %v289 = vadd.f32 0.0, %v288
    %v290 = vpop.f32.mrf.mxu0
    %v291 = vadd.f32 0.0, %v290
    %v292 = vpop.f32.mrf.mxu0
    %v293 = vadd.f32 0.0, %v292
    %v294 = vpop.f32.mrf.mxu0
    %v295 = vadd.f32 0.0, %v294
    %296 = vmatprep.mubr.bf16.mxu0 0
    %297 = vmatmul.mubr.bf16.gmra.mxu0 %v186
    %v298 = vpop.f32.mrf.mxu0
    %v299 = vadd.f32 0.0, %v298
    %v300 = vpop.f32.mrf.mxu0
    %v301 = vadd.f32 0.0, %v300
    %v302 = vpop.f32.mrf.mxu0
    %v303 = vadd.f32 0.0, %v302
    %v304 = vpop.f32.mrf.mxu0
    %v305 = vadd.f32 0.0, %v304
    %306 = vmatprep.mubr.bf16.mxu0 0
    %307 = vmatmul.mubr.bf16.gmra.mxu0 %v189
    %v308 = vpop.f32.mrf.mxu0
    %v309 = vadd.f32 0.0, %v308
    %v310 = vpop.f32.mrf.mxu0
    %v311 = vadd.f32 0.0, %v310
    %v312 = vpop.f32.mrf.mxu0
    %v313 = vadd.f32 0.0, %v312
    %v314 = vpop.f32.mrf.mxu0
    %v315 = vadd.f32 0.0, %v314
    %316 = vmatprep.mubr.bf16.mxu0 0
    %317 = vmatmul.mubr.bf16.gmra.mxu0 %v192
    %v318 = vpop.f32.mrf.mxu0
    %v319 = vadd.f32 0.0, %v318
    %v320 = vpop.f32.mrf.mxu0
    %v321 = vadd.f32 0.0, %v320
    %v322 = vpop.f32.mrf.mxu0
    %v323 = vadd.f32 0.0, %v322
    %v324 = vpop.f32.mrf.mxu0
    %v325 = vadd.f32 0.0, %v324
    %326 = vmatprep.mubr.bf16.mxu0 0
    %327 = vmatmul.mubr.bf16.gmra.mxu0 %v195
    %v328 = vpop.f32.mrf.mxu0
    %v329 = vadd.f32 0.0, %v328
    %v330 = vpop.f32.mrf.mxu0
    %v331 = vadd.f32 0.0, %v330
    %v332 = vpop.f32.mrf.mxu0
    %v333 = vadd.f32 0.0, %v332
    %v334 = vpop.f32.mrf.mxu0
    %v335 = vadd.f32 0.0, %v334
    %336 = vmatprep.mubr.bf16.mxu0 0
    %337 = vmatmul.mubr.bf16.gmra.mxu0 %v198
    %v338 = vpop.f32.mrf.mxu0
    %v339 = vadd.f32 0.0, %v338
    %v340 = vpop.f32.mrf.mxu0
    %v341 = vadd.f32 0.0, %v340
    %v342 = vpop.f32.mrf.mxu0
    %v343 = vadd.f32 0.0, %v342
    %v344 = vpop.f32.mrf.mxu0
    %v345 = vadd.f32 0.0, %v344
    %346 = vmatprep.mubr.bf16.mxu0 0
    %347 = vmatmul.mubr.bf16.gmra.mxu0 %v201
    %v348 = vpop.f32.mrf.mxu0
    %v349 = vadd.f32 0.0, %v348
    %v350 = vpop.f32.mrf.mxu0
    %v351 = vadd.f32 0.0, %v350
    %v352 = vpop.f32.mrf.mxu0
    %v353 = vadd.f32 0.0, %v352
    %v354 = vpop.f32.mrf.mxu0
    %v355 = vadd.f32 0.0, %v354
    %356 = vmatprep.mubr.bf16.mxu0 0
    %357 = vmatmul.mubr.bf16.gmra.mxu0 %v204
    %v358 = vpop.f32.mrf.mxu0
    %v359 = vadd.f32 0.0, %v358
    %v360 = vpop.f32.mrf.mxu0
    %v361 = vadd.f32 0.0, %v360
    %v362 = vpop.f32.mrf.mxu0
    %v363 = vadd.f32 0.0, %v362
    %v364 = vpop.f32.mrf.mxu0
    %v365 = vadd.f32 0.0, %v364
    %366 = vdwg.mxu0
    %367 = vst [vmem:[#allocation2] sm:$0xff] %v289
    %368 = vst [vmem:[#allocation2 + $0x8] sm:$0xff] %v291
    %369 = vst [vmem:[#allocation2 + $0x10] sm:$0xff] %v293
    %370 = vst [vmem:[#allocation2 + $0x18] sm:$0xff] %v295
    %371 = vst [vmem:[#allocation2 + $0x20] sm:$0xff] %v299
    %372 = vst [vmem:[#allocation2 + $0x28] sm:$0xff] %v301
    %373 = vst [vmem:[#allocation2 + $0x30] sm:$0xff] %v303
    %374 = vst [vmem:[#allocation2 + $0x38] sm:$0xff] %v305
    %375 = vst [vmem:[#allocation2 + $0x40] sm:$0xff] %v309
    %376 = vst [vmem:[#allocation2 + $0x48] sm:$0xff] %v311
    %377 = vst [vmem:[#allocation2 + $0x50] sm:$0xff] %v313
    %378 = vst [vmem:[#allocation2 + $0x58] sm:$0xff] %v315
    %379 = vst [vmem:[#allocation2 + $0x60] sm:$0xff] %v319
    %380 = vst [vmem:[#allocation2 + $0x68] sm:$0xff] %v321
    %381 = vst [vmem:[#allocation2 + $0x70] sm:$0xff] %v323
    %382 = vst [vmem:[#allocation2 + $0x78] sm:$0xff] %v325
    %383 = vst [vmem:[#allocation2 + $0x80] sm:$0xff] %v329
    %384 = vst [vmem:[#allocation2 + $0x88] sm:$0xff] %v331
    %385 = vst [vmem:[#allocation2 + $0x90] sm:$0xff] %v333
    %386 = vst [vmem:[#allocation2 + $0x98] sm:$0xff] %v335
    %387 = vst [vmem:[#allocation2 + $0xa0] sm:$0xff] %v339
    %388 = vst [vmem:[#allocation2 + $0xa8] sm:$0xff] %v341
    %389 = vst [vmem:[#allocation2 + $0xb0] sm:$0xff] %v343
    %390 = vst [vmem:[#allocation2 + $0xb8] sm:$0xff] %v345
    %391 = vst [vmem:[#allocation2 + $0xc0] sm:$0xff] %v349
    %392 = vst [vmem:[#allocation2 + $0xc8] sm:$0xff] %v351
    %393 = vst [vmem:[#allocation2 + $0xd0] sm:$0xff] %v353
    %394 = vst [vmem:[#allocation2 + $0xd8] sm:$0xff] %v355
    %395 = vst [vmem:[#allocation2 + $0xe0] sm:$0xff] %v359
    %396 = vst [vmem:[#allocation2 + $0xe8] sm:$0xff] %v361
    %397 = vst [vmem:[#allocation2 + $0xf0] sm:$0xff] %v363
    %398 = vst [vmem:[#allocation2 + $0xf8] sm:$0xff] %v365
    // Predicated region
    $region10: #{svd_ae_forward.5} parent=1 // pred_check
      _
    $region11: #{svd_ae_forward.5} parent=1 // pred_check_branch
      %400 = sbr.rel (0) target = $region13
    $region12: #{svd_ae_forward.5} parent=1 // pred_region
      %s402 = ssub.s32 4096, 4096
      %403 = vsyncadd [#allocation3], %s402
      %s404 = sshll.u32 [#allocation2], 4
      %s405 = int_to_ptr.vmem [resolvable:$true] %s404
      %410 = dma.vmem_to_hbm [thread:$0]  %s405, 4096, %s2, [#allocation3], 256, 256, 16
    $region13: #{svd_ae_forward.5} parent=1 // pred_fallthru
      _
    // Predicated region
    $region14: #{svd_ae_forward.5} parent=1 // pred_check
      _
    $region15: #{svd_ae_forward.5} parent=1 // pred_check_branch
      %412 = sbr.rel (0) target = $region17
    $region16: #{svd_ae_forward.5} parent=1 // pred_region
      %413 = dma.done [#allocation3], 4096
    $region17: #{svd_ae_forward.5} parent=1 // pred_fallthru
      _
    %414 = vsyncpa [#allocation3], 1

// kernel: svd_ae_forward.3
$region0: #{svd_ae_forward.3}
  #allocation0 [shape = 'u32[]', space=smem, size = 0x4, offset = 0x4, fixed_abs, tag = 'smem constant byte address 0x4 - core index']
  #allocation1 [shape = 'u32[144,128]{1,0:T(1,128)}', space=vmem, size = 0x12000, scoped, tag = 'internal scratch']
  %s0 = inlined_call_operand.vmem [shape: f32[128,256], index: 0, kind: input, shape index: {}]
  %s1 = inlined_call_operand.vmem [shape: f32[256,32], index: 1, kind: input, shape index: {}]
  %s2 = inlined_call_operand.vmem [shape: f32[128,32], index: 2, kind: output, shape index: {}]
  %s3 = sld [smem:[#allocation0]]
  $region22: #{svd_ae_forward.3} parent=0
    _
  %s5 = ssub.s32 1, %s3
  %s6 = scalar_select 0, %s5, %s3
  // Predicated region
  $region2: #{svd_ae_forward.3} parent=0 // pred_check
    _
  $region3: #{svd_ae_forward.3} parent=0 // pred_check_branch
    %8 = sbr.rel (0) target = $region5
  $region4: #{svd_ae_forward.3} parent=0 // pred_region
    _
  $region5: #{svd_ae_forward.3} parent=0 // pred_fallthru
    _
  // Predicated region
  $region6: #{svd_ae_forward.3} parent=0 // pred_check
    _
  $region7: #{svd_ae_forward.3} parent=0 // pred_check_branch
    %10 = sbr.rel (0) target = $region9
  $region8: #{svd_ae_forward.3} parent=0 // pred_region
    _
  $region9: #{svd_ae_forward.3} parent=0 // pred_fallthru
    _
  %p12 = scmp.eq.s32.totalorder 0, 0
  // Predicated region
  $region10: #{svd_ae_forward.3} parent=0 // pred_check
    %p13 = pneg %p12
  $region11: #{svd_ae_forward.3} parent=0 // pred_check_branch
    %15 = sbr.rel (%p13) target = $region13
  $region12: #{svd_ae_forward.3} parent=0 // pred_region
    %vm16 = vcmask 261120
    %17 = vst.msk [vmem:[%s2] sm:$0xff] %vm16, 0.0
    %18 = vst.msk [vmem:[%s2 + $0x8] sm:$0xff] %vm16, 0.0
    %19 = vst.msk [vmem:[%s2 + $0x10] sm:$0xff] %vm16, 0.0
    %20 = vst.msk [vmem:[%s2 + $0x18] sm:$0xff] %vm16, 0.0
    %21 = vst.msk [vmem:[%s2 + $0x20] sm:$0xff] %vm16, 0.0
    %22 = vst.msk [vmem:[%s2 + $0x28] sm:$0xff] %vm16, 0.0
    %23 = vst.msk [vmem:[%s2 + $0x30] sm:$0xff] %vm16, 0.0
    %24 = vst.msk [vmem:[%s2 + $0x38] sm:$0xff] %vm16, 0.0
    %25 = vst.msk [vmem:[%s2 + $0x40] sm:$0xff] %vm16, 0.0
    %26 = vst.msk [vmem:[%s2 + $0x48] sm:$0xff] %vm16, 0.0
    %27 = vst.msk [vmem:[%s2 + $0x50] sm:$0xff] %vm16, 0.0
    %28 = vst.msk [vmem:[%s2 + $0x58] sm:$0xff] %vm16, 0.0
    %29 = vst.msk [vmem:[%s2 + $0x60] sm:$0xff] %vm16, 0.0
    %30 = vst.msk [vmem:[%s2 + $0x68] sm:$0xff] %vm16, 0.0
    %31 = vst.msk [vmem:[%s2 + $0x70] sm:$0xff] %vm16, 0.0
    %32 = vst.msk [vmem:[%s2 + $0x78] sm:$0xff] %vm16, 0.0
  $region13: #{svd_ae_forward.3} parent=0 // pred_fallthru
    _
  %v33 = vld [vmem:[%s2] sm:$0xff]
  %v34 = vld [vmem:[%s2 + $0x8] sm:$0xff]
  %v35 = vld [vmem:[%s2 + $0x10] sm:$0xff]
  %v36 = vld [vmem:[%s2 + $0x18] sm:$0xff]
  %v37 = vld [vmem:[%s2 + $0x20] sm:$0xff]
  %v38 = vld [vmem:[%s2 + $0x28] sm:$0xff]
  %v39 = vld [vmem:[%s2 + $0x30] sm:$0xff]
  %v40 = vld [vmem:[%s2 + $0x38] sm:$0xff]
  %v41 = vld [vmem:[%s2 + $0x40] sm:$0xff]
  %v42 = vld [vmem:[%s2 + $0x48] sm:$0xff]
  %v43 = vld [vmem:[%s2 + $0x50] sm:$0xff]
  %v44 = vld [vmem:[%s2 + $0x58] sm:$0xff]
  %v45 = vld [vmem:[%s2 + $0x60] sm:$0xff]
  %v46 = vld [vmem:[%s2 + $0x68] sm:$0xff]
  %v47 = vld [vmem:[%s2 + $0x70] sm:$0xff]
  %v48 = vld [vmem:[%s2 + $0x78] sm:$0xff]
  %v49 = vld [vmem:[%s0] sm:$0xff]
  %v50 = vld [vmem:[%s0 + $0x8] sm:$0xff]
  %v51 = vld [vmem:[%s0 + $0x10] sm:$0xff]
  %v52 = vld [vmem:[%s0 + $0x18] sm:$0xff]
  %v53 = vld [vmem:[%s0 + $0x20] sm:$0xff]
  %v54 = vld [vmem:[%s0 + $0x28] sm:$0xff]
  %v55 = vld [vmem:[%s0 + $0x30] sm:$0xff]
  %v56 = vld [vmem:[%s0 + $0x38] sm:$0xff]
  %v57 = vld [vmem:[%s0 + $0x40] sm:$0xff]
  %v58 = vld [vmem:[%s0 + $0x48] sm:$0xff]
  %v59 = vld [vmem:[%s0 + $0x50] sm:$0xff]
  %v60 = vld [vmem:[%s0 + $0x58] sm:$0xff]
  %v61 = vld [vmem:[%s0 + $0x60] sm:$0xff]
  %v62 = vld [vmem:[%s0 + $0x68] sm:$0xff]
  %v63 = vld [vmem:[%s0 + $0x70] sm:$0xff]
  %v64 = vld [vmem:[%s0 + $0x78] sm:$0xff]
  %v65 = vld [vmem:[%s0 + $0x80] sm:$0xff]
  %v66 = vld [vmem:[%s0 + $0x88] sm:$0xff]
  %v67 = vld [vmem:[%s0 + $0x90] sm:$0xff]
  %v68 = vld [vmem:[%s0 + $0x98] sm:$0xff]
  %v69 = vld [vmem:[%s0 + $0xa0] sm:$0xff]
  %v70 = vld [vmem:[%s0 + $0xa8] sm:$0xff]
  %v71 = vld [vmem:[%s0 + $0xb0] sm:$0xff]
  %v72 = vld [vmem:[%s0 + $0xb8] sm:$0xff]
  %v73 = vld [vmem:[%s0 + $0xc0] sm:$0xff]
  %v74 = vld [vmem:[%s0 + $0xc8] sm:$0xff]
  %v75 = vld [vmem:[%s0 + $0xd0] sm:$0xff]
  %v76 = vld [vmem:[%s0 + $0xd8] sm:$0xff]
  %v77 = vld [vmem:[%s0 + $0xe0] sm:$0xff]
  %v78 = vld [vmem:[%s0 + $0xe8] sm:$0xff]
  %v79 = vld [vmem:[%s0 + $0xf0] sm:$0xff]
  %v80 = vld [vmem:[%s0 + $0xf8] sm:$0xff]
  %v81 = vpack.c.bf16 %v51, %v49
  %v82 = vpack.c.bf16 %v52, %v50
  %v83 = vpack.c.bf16 %v55, %v53
  %v84 = vpack.c.bf16 %v56, %v54
  %v85 = vpack.c.bf16 %v59, %v57
  %v86 = vpack.c.bf16 %v60, %v58
  %v87 = vpack.c.bf16 %v63, %v61
  %v88 = vpack.c.bf16 %v64, %v62
  %v89 = vpack.c.bf16 %v67, %v65
  %v90 = vpack.c.bf16 %v68, %v66
  %v91 = vpack.c.bf16 %v71, %v69
  %v92 = vpack.c.bf16 %v72, %v70
  %v93 = vpack.c.bf16 %v75, %v73
  %v94 = vpack.c.bf16 %v76, %v74
  %v95 = vpack.c.bf16 %v79, %v77
  %v96 = vpack.c.bf16 %v80, %v78
  %v97 = vld [vmem:[%s1] sm:$0xff]
  %v98 = vld [vmem:[%s1 + $0x8] sm:$0xff]
  %v99 = vld [vmem:[%s1 + $0x10] sm:$0xff]
  %v100 = vld [vmem:[%s1 + $0x18] sm:$0xff]
  %v101 = vld [vmem:[%s1 + $0x20] sm:$0xff]
  %v102 = vld [vmem:[%s1 + $0x28] sm:$0xff]
  %v103 = vld [vmem:[%s1 + $0x30] sm:$0xff]
  %v104 = vld [vmem:[%s1 + $0x38] sm:$0xff]
  %v105 = vld [vmem:[%s1 + $0x40] sm:$0xff]
  %v106 = vld [vmem:[%s1 + $0x48] sm:$0xff]
  %v107 = vld [vmem:[%s1 + $0x50] sm:$0xff]
  %v108 = vld [vmem:[%s1 + $0x58] sm:$0xff]
  %v109 = vld [vmem:[%s1 + $0x60] sm:$0xff]
  %v110 = vld [vmem:[%s1 + $0x68] sm:$0xff]
  %v111 = vld [vmem:[%s1 + $0x70] sm:$0xff]
  %v112 = vld [vmem:[%s1 + $0x78] sm:$0xff]
  %v113 = vld [vmem:[%s1 + $0x80] sm:$0xff]
  %v114 = vld [vmem:[%s1 + $0x88] sm:$0xff]
  %v115 = vld [vmem:[%s1 + $0x90] sm:$0xff]
  %v116 = vld [vmem:[%s1 + $0x98] sm:$0xff]
  %v117 = vld [vmem:[%s1 + $0xa0] sm:$0xff]
  %v118 = vld [vmem:[%s1 + $0xa8] sm:$0xff]
  %v119 = vld [vmem:[%s1 + $0xb0] sm:$0xff]
  %v120 = vld [vmem:[%s1 + $0xb8] sm:$0xff]
  %v121 = vld [vmem:[%s1 + $0xc0] sm:$0xff]
  %v122 = vld [vmem:[%s1 + $0xc8] sm:$0xff]
  %v123 = vld [vmem:[%s1 + $0xd0] sm:$0xff]
  %v124 = vld [vmem:[%s1 + $0xd8] sm:$0xff]
  %v125 = vld [vmem:[%s1 + $0xe0] sm:$0xff]
  %v126 = vld [vmem:[%s1 + $0xe8] sm:$0xff]
  %v127 = vld [vmem:[%s1 + $0xf0] sm:$0xff]
  %v128 = vld [vmem:[%s1 + $0xf8] sm:$0xff]
  %v129 = vpack.c.bf16 %v98, %v97
  %v130 = vpack.c.bf16 %v100, %v99
  %v131 = vpack.c.bf16 %v102, %v101
  %v132 = vpack.c.bf16 %v104, %v103
  %v133 = vpack.c.bf16 %v106, %v105
  %v134 = vpack.c.bf16 %v108, %v107
  %v135 = vpack.c.bf16 %v110, %v109
  %v136 = vpack.c.bf16 %v112, %v111
  %v137 = vpack.c.bf16 %v114, %v113
  %v138 = vpack.c.bf16 %v116, %v115
  %v139 = vpack.c.bf16 %v118, %v117
  %v140 = vpack.c.bf16 %v120, %v119
  %v141 = vpack.c.bf16 %v122, %v121
  %v142 = vpack.c.bf16 %v124, %v123
  %v143 = vpack.c.bf16 %v126, %v125
  %v144 = vpack.c.bf16 %v128, %v127
  %145 = vmatprep.subr.bf16.mxu0 0
  %146 = vmatpush1.bf16.msra.mxu0 %v136
  %147 = vmatprep.subr.bf16.mxu0 0
  %148 = vmatpush1.bf16.msra.mxu0 %v135
  %149 = vmatprep.subr.bf16.mxu0 0
  %150 = vmatpush1.bf16.msra.mxu0 %v134
  %151 = vmatprep.subr.bf16.mxu0 0
  %152 = vmatpush1.bf16.msra.mxu0 %v133
  %153 = vmatprep.subr.bf16.mxu0 0
  %154 = vmatpush1.bf16.msra.mxu0 %v132
  %155 = vmatprep.subr.bf16.mxu0 0
  %156 = vmatpush1.bf16.msra.mxu0 %v131
  %157 = vmatprep.subr.bf16.mxu0 0
  %158 = vmatpush1.bf16.msra.mxu0 %v130
  %159 = vmatprep.subr.bf16.mxu0 0
  %160 = vmatpush1.bf16.msra.mxu0 %v129
  %161 = vmatprep.subr.bf16.mxu0 0
  %162 = vmatpush2.bf16.msra.mxu0 %v144
  %163 = vmatprep.subr.bf16.mxu0 0
  %164 = vmatpush2.bf16.msra.mxu0 %v143
  %165 = vmatprep.subr.bf16.mxu0 0
  %166 = vmatpush2.bf16.msra.mxu0 %v142
  %167 = vmatprep.subr.bf16.mxu0 0
  %168 = vmatpush2.bf16.msra.mxu0 %v141
  %169 = vmatprep.subr.bf16.mxu0 0
  %170 = vmatpush2.bf16.msra.mxu0 %v140
  %171 = vmatprep.subr.bf16.mxu0 0
  %172 = vmatpush2.bf16.msra.mxu0 %v139
  %173 = vmatprep.subr.bf16.mxu0 0
  %174 = vmatpush2.bf16.msra.mxu0 %v138
  %175 = vmatprep.subr.bf16.mxu0 0
  %176 = vmatpush2.bf16.msra.mxu0 %v137
  %177 = vmatprep.mubr.bf16.mxu0 %v82
  %178 = vmatmul.mubr.bf16.gmra.mxu0 %v81
  %v179 = vpop.f32.mrf.mxu0
  %v180 = vadd.f32 0.0, %v179
  %v181 = vpop.f32.mrf.mxu0
  %v182 = vpop.f32.mrf.mxu0
  %v183 = vadd.f32 0.0, %v182
  %v184 = vpop.f32.mrf.mxu0
  %185 = vmatprep.mubr.bf16.mxu0 %v84
  %186 = vmatmul.mubr.bf16.gmra.mxu0 %v83
  %v187 = vpop.f32.mrf.mxu0
  %v188 = vadd.f32 0.0, %v187
  %v189 = vpop.f32.mrf.mxu0
  %v190 = vpop.f32.mrf.mxu0
  %v191 = vadd.f32 0.0, %v190
  %v192 = vpop.f32.mrf.mxu0
  %193 = vmatprep.mubr.bf16.mxu0 %v86
  %194 = vmatmul.mubr.bf16.gmra.mxu0 %v85
  %v195 = vpop.f32.mrf.mxu0
  %v196 = vadd.f32 0.0, %v195
  %v197 = vpop.f32.mrf.mxu0
  %v198 = vpop.f32.mrf.mxu0
  %v199 = vadd.f32 0.0, %v198
  %v200 = vpop.f32.mrf.mxu0
  %201 = vmatprep.mubr.bf16.mxu0 %v88
  %202 = vmatmul.mubr.bf16.gmra.mxu0 %v87
  %v203 = vpop.f32.mrf.mxu0
  %v204 = vadd.f32 0.0, %v203
  %v205 = vpop.f32.mrf.mxu0
  %v206 = vpop.f32.mrf.mxu0
  %v207 = vadd.f32 0.0, %v206
  %v208 = vpop.f32.mrf.mxu0
  %209 = vmatprep.mubr.bf16.mxu0 %v90
  %210 = vmatmul.mubr.bf16.gmra.mxu0 %v89
  %v211 = vpop.f32.mrf.mxu0
  %v212 = vadd.f32 0.0, %v211
  %v213 = vpop.f32.mrf.mxu0
  %v214 = vpop.f32.mrf.mxu0
  %v215 = vadd.f32 0.0, %v214
  %v216 = vpop.f32.mrf.mxu0
  %217 = vmatprep.mubr.bf16.mxu0 %v92
  %218 = vmatmul.mubr.bf16.gmra.mxu0 %v91
  %v219 = vpop.f32.mrf.mxu0
  %v220 = vadd.f32 0.0, %v219
  %v221 = vpop.f32.mrf.mxu0
  %v222 = vpop.f32.mrf.mxu0
  %v223 = vadd.f32 0.0, %v222
  %v224 = vpop.f32.mrf.mxu0
  %225 = vmatprep.mubr.bf16.mxu0 %v94
  %226 = vmatmul.mubr.bf16.gmra.mxu0 %v93
  %v227 = vpop.f32.mrf.mxu0
  %v228 = vadd.f32 0.0, %v227
  %v229 = vpop.f32.mrf.mxu0
  %v230 = vpop.f32.mrf.mxu0
  %v231 = vadd.f32 0.0, %v230
  %v232 = vpop.f32.mrf.mxu0
  %233 = vmatprep.mubr.bf16.mxu0 %v96
  %234 = vmatmul.mubr.bf16.gmra.mxu0 %v95
  %v235 = vpop.f32.mrf.mxu0
  %v236 = vadd.f32 0.0, %v235
  %v237 = vpop.f32.mrf.mxu0
  %v238 = vpop.f32.mrf.mxu0
  %v239 = vadd.f32 0.0, %v238
  %v240 = vpop.f32.mrf.mxu0
  %241 = vdwg.mxu0
  %v242 = vadd.f32 %v33, %v180
  %v243 = vadd.f32 %v34, %v183
  %v244 = vadd.f32 %v35, %v188
  %v245 = vadd.f32 %v36, %v191
  %v246 = vadd.f32 %v37, %v196
  %v247 = vadd.f32 %v38, %v199
  %v248 = vadd.f32 %v39, %v204
  %v249 = vadd.f32 %v40, %v207
  %v250 = vadd.f32 %v41, %v212
  %v251 = vadd.f32 %v42, %v215
  %v252 = vadd.f32 %v43, %v220
  %v253 = vadd.f32 %v44, %v223
  %v254 = vadd.f32 %v45, %v228
  %v255 = vadd.f32 %v46, %v231
  %v256 = vadd.f32 %v47, %v236
  %v257 = vadd.f32 %v48, %v239
  %vm258 = vcmask 261120
  %259 = vst.msk [vmem:[%s2] sm:$0xff] %vm258, %v242
  %260 = vst.msk [vmem:[%s2 + $0x8] sm:$0xff] %vm258, %v243
  %261 = vst.msk [vmem:[%s2 + $0x10] sm:$0xff] %vm258, %v244
  %262 = vst.msk [vmem:[%s2 + $0x18] sm:$0xff] %vm258, %v245
  %263 = vst.msk [vmem:[%s2 + $0x20] sm:$0xff] %vm258, %v246
  %264 = vst.msk [vmem:[%s2 + $0x28] sm:$0xff] %vm258, %v247
  %265 = vst.msk [vmem:[%s2 + $0x30] sm:$0xff] %vm258, %v248
  %266 = vst.msk [vmem:[%s2 + $0x38] sm:$0xff] %vm258, %v249
  %267 = vst.msk [vmem:[%s2 + $0x40] sm:$0xff] %vm258, %v250
  %268 = vst.msk [vmem:[%s2 + $0x48] sm:$0xff] %vm258, %v251
  %269 = vst.msk [vmem:[%s2 + $0x50] sm:$0xff] %vm258, %v252
  %270 = vst.msk [vmem:[%s2 + $0x58] sm:$0xff] %vm258, %v253
  %271 = vst.msk [vmem:[%s2 + $0x60] sm:$0xff] %vm258, %v254
  %272 = vst.msk [vmem:[%s2 + $0x68] sm:$0xff] %vm258, %v255
  %273 = vst.msk [vmem:[%s2 + $0x70] sm:$0xff] %vm258, %v256
  %274 = vst.msk [vmem:[%s2 + $0x78] sm:$0xff] %vm258, %v257
  // Predicated region
  $region14: #{svd_ae_forward.3} parent=0 // pred_check
    _
  $region15: #{svd_ae_forward.3} parent=0 // pred_check_branch
    %276 = sbr.rel (0) target = $region17
  $region16: #{svd_ae_forward.3} parent=0 // pred_region
    _
  $region17: #{svd_ae_forward.3} parent=0 // pred_fallthru
    _
  // Predicated region
  $region18: #{svd_ae_forward.3} parent=0 // pred_check
    _
  $region19: #{svd_ae_forward.3} parent=0 // pred_check_branch
    %278 = sbr.rel (0) target = $region21
  $region20: #{svd_ae_forward.3} parent=0 // pred_region
    _
  $region21: #{svd_ae_forward.3} parent=0 // pred_fallthru
    _

</llo_original>
